<compile_context>
chip_gen: v5e
topology: v5e:2x2
jax: 0.10.0
libtpu: 0.0.40
codegen_flags: <defaults>
</compile_context>

<pallas_src>
import jax
import jax.numpy as jnp
from jax.experimental import pallas as pl
from jax.experimental.pallas import tpu as pltpu

_MiB = 1024 * 1024


def _tpu_generation_budget():
    """Returns (per-block byte budget, base vmem_limit_bytes, vmem capacity or None).

    Per-block budget targets <10% per-grid-step overhead (~0.35us/step) on each
    generation's HBM bandwidth while keeping the in+out double-buffered
    pipeline (~4x block bytes) comfortably inside scoped VMEM.
    """
    vmem_cap = None
    try:
        vmem_cap = int(pltpu.get_tpu_info().vmem_capacity_bytes)
    except Exception:
        pass
    kind = ""
    try:
        kind = jax.devices()[0].device_kind.lower()
    except Exception:
        pass

    if vmem_cap is not None and vmem_cap <= 80 * _MiB:
        # v7x-class core: 64 MiB VMEM, ~3.2 TB/s HBM. Per-step overhead is
        # proportionally most expensive here, but VMEM is the binding
        # constraint: ~8 MiB blocks -> ~32 MiB pipeline, leave headroom.
        return 8 * _MiB, 44 * _MiB, vmem_cap
    if "v5" in kind:
        # v5e: ~0.82 TB/s HBM; 4 MiB blocks already push step overhead <10%.
        # Default scoped VMEM is only 16 MiB, so make the limit explicit.
        return 4 * _MiB, 24 * _MiB, vmem_cap
    # v6e / default: 128 MiB VMEM, ~1.4 TB/s HBM.
    return 12 * _MiB, 64 * _MiB, vmem_cap


def _largest_aligned_divisor(n, align, unit_bytes, budget_bytes):
    """Largest divisor d of n with d % align == 0 and d * unit_bytes <= budget."""
    best = None
    d = align
    while d <= n:
        if n % d == 0 and d * unit_bytes <= budget_bytes:
            best = d
        d += align
    return best


def _pick_t_hw(HW, cpg, itemsize, budget_bytes):
    """Lane tile: prefer >=512B per strided input-row DMA descriptor, divide HW,
    fit the per-block budget; only degrade to the minimum legal 128 lanes."""
    min_gran = max(128, 512 // itemsize)  # 128 lanes f32, 256 bf16, 512 int8
    for align in dict.fromkeys((min_gran, 128)):
        t = _largest_aligned_divisor(HW, align, cpg * itemsize, budget_bytes)
        if t is not None:
            return t
    return 128  # even the smallest legal tile exceeds budget; caller raises vmem limit


def _copy_kernel(x_ref, o_ref):
    # (C//g, t_hw) VMEM tiles; the channel permutation is done entirely by the
    # BlockSpec index maps, the body is a pure copy.
    o_ref[...] = x_ref[...]


def _make_dma_shuffle_kernel(g, HW):
    def kernel(x_hbm, o_hbm, sems):
        # x_hbm: (N, g, C//g, HW) in HBM; o_hbm: (N, C//g, g*HW) in HBM.
        # For batch n: out[n, :, r*HW:(r+1)*HW] <- x[n, r]  (strided HBM->HBM DMA).
        n = pl.program_id(0)
        copies = [
            pltpu.make_async_copy(
                x_hbm.at[n, r],                          # contiguous (C//g, HW)
                o_hbm.at[n, :, pl.ds(r * HW, HW)],       # strided   (C//g, HW)
                sems.at[r],
            )
            for r in range(g)
        ]
        for c in copies:   # keep all g transfers in flight
            c.start()
        for c in copies:
            c.wait()
    return kernel


def shuffle_block(x: jax.Array, groups: int) -> jax.Array:
    """Channel shuffle: [N,C,H,W] -> [N,g,C/g,H,W] -> [N,C/g,g,H,W] -> [N,C,H,W]."""
    N, C, H, W = x.shape
    g = int(groups)
    assert C % g == 0, "C must be divisible by groups"
    cpg = C // g
    HW = H * W
    itemsize = jnp.dtype(x.dtype).itemsize

    if g == 1:
        return x  # identity

    x_view = x.reshape(N, g, cpg, HW)  # contiguous reshape (free)
    sublane = max(8, 32 // itemsize)   # 8 f32, 16 bf16, 32 int8

    if HW % 128 == 0 and cpg >= sublane:
        # ---- Fast path: permutation via index maps, lane-dense VMEM tiles. ----
        block_budget, base_limit, vmem_cap = _tpu_generation_budget()
        t_hw = _pick_t_hw(HW, cpg, itemsize, block_budget)
        n_hw = HW // t_hw
        # v7x has 2 TensorCores: if the budget collapsed n_hw to 1 and N*g is
        # odd, split the lane axis once so both cores get balanced work.
        if n_hw == 1 and (N * g) % 2 == 1 and HW % 256 == 0:
            t_hw = HW // 2
            n_hw = 2

        block_bytes = cpg * t_hw * itemsize
        # in + out, double-buffered -> ~4x block bytes; keep explicit headroom.
        vmem_limit = max(base_limit, 4 * block_bytes + 4 * _MiB)
        if vmem_cap is not None:
            vmem_limit = min(vmem_limit, vmem_cap)

        out = pl.pallas_call(
            _copy_kernel,
            out_shape=jax.ShapeDtypeStruct((N, cpg, g * HW), x.dtype),
            grid_spec=pltpu.PrefetchScalarGridSpec(
                num_scalar_prefetch=0,
                grid=(N, g, n_hw),
                in_specs=[
                    # If profiling shows exposed strided-input DMA, add
                    # pipeline_mode=pl.Buffered(3) here (costs one extra buffer).
                    pl.BlockSpec((None, None, cpg, t_hw),
                                 lambda n, r, t: (n, r, 0, t)),
                ],
                # out[n, :, r*HW + t*t_hw : ...] <- x[n, r, :, t*t_hw : ...]
                out_specs=pl.BlockSpec((None, cpg, t_hw),
                                       lambda n, r, t: (n, 0, r * n_hw + t)),
            ),
            compiler_params=pltpu.CompilerParams(
                dimension_semantics=("parallel", "parallel", "parallel"),
                vmem_limit_bytes=int(vmem_limit)),
        )(x_view)
        # (N, C//g, g*HW) flattens row-major to channel order q*g + r == shuffled.
        return out.reshape(N, C, H, W)

    # ---- DMA path: HW not lane-aligned or C/g below the sublane tile.
    # ---- Strided HBM->HBM copies do the shuffle with zero VMEM staging.
    out = pl.pallas_call(
        _make_dma_shuffle_kernel(g, HW),
        out_shape=jax.ShapeDtypeStruct((N, cpg, g * HW), x.dtype),
        grid_spec=pltpu.PrefetchScalarGridSpec(
            num_scalar_prefetch=0,
            grid=(N,),
            in_specs=[pl.BlockSpec(memory_space=pl.ANY)],
            out_specs=pl.BlockSpec(memory_space=pl.ANY),
            scratch_shapes=[pltpu.SemaphoreType.DMA((g,))],
        ),
        compiler_params=pltpu.CompilerParams(
            dimension_semantics=("parallel",)),
    )(x_view)
    return out.reshape(N, C, H, W)


def shuffle_block_ref(x: jax.Array, groups: int) -> jax.Array:
    """Pure-JAX reference matching the PyTorch forward exactly."""
    N, C, H, W = x.shape
    g = groups
    return (
        x.reshape(N, g, C // g, H, W)
        .transpose(0, 2, 1, 3, 4)
        .reshape(N, C, H, W)
    )


if __name__ == "__main__":
    key = jax.random.PRNGKey(0)

    # Case 1: module-default small shape (cpg < sublane -> HBM->HBM DMA path).
    groups = 2
    N, C, H, W = 2, 4, 16, 16
    x = jax.random.normal(key, (N, C, H, W), dtype=jnp.float32)
    y = jax.block_until_ready(shuffle_block(x, groups))
    assert y.shape == (N, C, H, W) and y.dtype == x.dtype
    assert jnp.array_equal(y, shuffle_block_ref(x, groups)), "mismatch (DMA path, aligned HW)"

    # Case 2: non-lane-aligned spatial (HW=49 -> DMA path).
    groups2 = 3
    x2 = jax.random.normal(jax.random.PRNGKey(0), (2, 6, 7, 7), dtype=jnp.float32)
    y2 = jax.block_until_ready(shuffle_block(x2, groups2))
    assert jnp.array_equal(y2, shuffle_block_ref(x2, groups2)), "mismatch (DMA path, HW=49)"

    # Case 3: lane-aligned spatial with full sublane channels (fast BlockSpec path).
    groups3 = 4
    x3 = jax.random.normal(jax.random.PRNGKey(0), (2, 32, 16, 16), dtype=jnp.float32)
    y3 = jax.block_until_ready(shuffle_block(x3, groups3))
    assert jnp.array_equal(y3, shuffle_block_ref(x3, groups3)), "mismatch (fast path)"

    print("KERNEL_OK")
</pallas_src>

<mosaic_0001>
module attributes {stable_mosaic.version = 11 : i64} {
  func.func @kernel(%arg0: i32, %arg1: memref<2x2x2x256xf32, #tpu.memory_space<any>>, %arg2: memref<2x2x512xf32, #tpu.memory_space<any>>, %arg3: memref<2x!tpu.dma_semaphore, #tpu.memory_space<semaphore_mem>>) attributes {dimension_semantics = [#tpu.dimension_semantics<parallel>], iteration_bounds = array<i64: 2>, scalar_prefetch = 0 : i64, scratch_operands = 1 : i64, tpu.core_type = #tpu.core_type<tc>, window_params = [{}, {}]} {
    %c0_i32 = arith.constant 0 : i32
    %c0_i32_0 = arith.constant 0 : i32
    %c0_i32_1 = arith.constant 0 : i32
    %c0_i32_2 = arith.constant 0 : i32
    %0 = tpu.memref_slice %arg1[%arg0, %c0_i32, %c0_i32_1, %c0_i32_2] : memref<2x2x2x256xf32, #tpu.memory_space<any>> -> memref<1x1x2x256xf32, #tpu.memory_space<any>>
    %1 = tpu.memref_squeeze %0 : memref<1x1x2x256xf32, #tpu.memory_space<any>> -> memref<2x256xf32, #tpu.memory_space<any>>
    %c0_i32_3 = arith.constant 0 : i32
    %c0_i32_4 = arith.constant 0 : i32
    %2 = tpu.memref_slice %arg2[%arg0, %c0_i32_3, %c0_i32_4] : memref<2x2x512xf32, #tpu.memory_space<any>> -> memref<1x2x256xf32, #tpu.memory_space<any>>
    %3 = tpu.memref_squeeze %2 : memref<1x2x256xf32, #tpu.memory_space<any>> -> memref<2x256xf32, #tpu.memory_space<any>>
    %4 = tpu.memref_slice %arg3[%c0_i32_0] : memref<2x!tpu.dma_semaphore, #tpu.memory_space<semaphore_mem>> -> memref<1x!tpu.dma_semaphore, #tpu.memory_space<semaphore_mem>>
    %5 = tpu.memref_squeeze %4 : memref<1x!tpu.dma_semaphore, #tpu.memory_space<semaphore_mem>> -> memref<!tpu.dma_semaphore, #tpu.memory_space<semaphore_mem>>
    tpu.enqueue_dma source(%1 : memref<2x256xf32, #tpu.memory_space<any>>) target(%3 : memref<2x256xf32, #tpu.memory_space<any>>) target_semaphore(%5 : memref<!tpu.dma_semaphore, #tpu.memory_space<semaphore_mem>>)
    %c1_i32 = arith.constant 1 : i32
    %c1_i32_5 = arith.constant 1 : i32
    %c0_i32_6 = arith.constant 0 : i32
    %c0_i32_7 = arith.constant 0 : i32
    %6 = tpu.memref_slice %arg1[%arg0, %c1_i32, %c0_i32_6, %c0_i32_7] : memref<2x2x2x256xf32, #tpu.memory_space<any>> -> memref<1x1x2x256xf32, #tpu.memory_space<any>>
    %7 = tpu.memref_squeeze %6 : memref<1x1x2x256xf32, #tpu.memory_space<any>> -> memref<2x256xf32, #tpu.memory_space<any>>
    %c0_i32_8 = arith.constant 0 : i32
    %c256_i32 = arith.constant 256 : i32
    %8 = tpu.memref_slice %arg2[%arg0, %c0_i32_8, %c256_i32] : memref<2x2x512xf32, #tpu.memory_space<any>> -> memref<1x2x256xf32, #tpu.memory_space<any>>
    %9 = tpu.memref_squeeze %8 : memref<1x2x256xf32, #tpu.memory_space<any>> -> memref<2x256xf32, #tpu.memory_space<any>>
    %10 = tpu.memref_slice %arg3[%c1_i32_5] : memref<2x!tpu.dma_semaphore, #tpu.memory_space<semaphore_mem>> -> memref<1x!tpu.dma_semaphore, #tpu.memory_space<semaphore_mem>>
    %11 = tpu.memref_squeeze %10 : memref<1x!tpu.dma_semaphore, #tpu.memory_space<semaphore_mem>> -> memref<!tpu.dma_semaphore, #tpu.memory_space<semaphore_mem>>
    tpu.enqueue_dma source(%7 : memref<2x256xf32, #tpu.memory_space<any>>) target(%9 : memref<2x256xf32, #tpu.memory_space<any>>) target_semaphore(%11 : memref<!tpu.dma_semaphore, #tpu.memory_space<semaphore_mem>>)
    %c0_i32_9 = arith.constant 0 : i32
    %c0_i32_10 = arith.constant 0 : i32
    %c0_i32_11 = arith.constant 0 : i32
    %c0_i32_12 = arith.constant 0 : i32
    %12 = tpu.memref_slice %arg1[%arg0, %c0_i32_9, %c0_i32_11, %c0_i32_12] : memref<2x2x2x256xf32, #tpu.memory_space<any>> -> memref<1x1x2x256xf32, #tpu.memory_space<any>>
    %13 = tpu.memref_squeeze %12 : memref<1x1x2x256xf32, #tpu.memory_space<any>> -> memref<2x256xf32, #tpu.memory_space<any>>
    %c0_i32_13 = arith.constant 0 : i32
    %c0_i32_14 = arith.constant 0 : i32
    %14 = tpu.memref_slice %arg2[%arg0, %c0_i32_13, %c0_i32_14] : memref<2x2x512xf32, #tpu.memory_space<any>> -> memref<1x2x256xf32, #tpu.memory_space<any>>
    %15 = tpu.memref_squeeze %14 : memref<1x2x256xf32, #tpu.memory_space<any>> -> memref<2x256xf32, #tpu.memory_space<any>>
    %16 = tpu.memref_slice %arg3[%c0_i32_10] : memref<2x!tpu.dma_semaphore, #tpu.memory_space<semaphore_mem>> -> memref<1x!tpu.dma_semaphore, #tpu.memory_space<semaphore_mem>>
    %17 = tpu.memref_squeeze %16 : memref<1x!tpu.dma_semaphore, #tpu.memory_space<semaphore_mem>> -> memref<!tpu.dma_semaphore, #tpu.memory_space<semaphore_mem>>
    tpu.wait_dma2 semaphore(%17 : memref<!tpu.dma_semaphore, #tpu.memory_space<semaphore_mem>>) src(%13 : memref<2x256xf32, #tpu.memory_space<any>>) dst(%15 : memref<2x256xf32, #tpu.memory_space<any>>)
    %c1_i32_15 = arith.constant 1 : i32
    %c1_i32_16 = arith.constant 1 : i32
    %c0_i32_17 = arith.constant 0 : i32
    %c0_i32_18 = arith.constant 0 : i32
    %18 = tpu.memref_slice %arg1[%arg0, %c1_i32_15, %c0_i32_17, %c0_i32_18] : memref<2x2x2x256xf32, #tpu.memory_space<any>> -> memref<1x1x2x256xf32, #tpu.memory_space<any>>
    %19 = tpu.memref_squeeze %18 : memref<1x1x2x256xf32, #tpu.memory_space<any>> -> memref<2x256xf32, #tpu.memory_space<any>>
    %c0_i32_19 = arith.constant 0 : i32
    %c256_i32_20 = arith.constant 256 : i32
    %20 = tpu.memref_slice %arg2[%arg0, %c0_i32_19, %c256_i32_20] : memref<2x2x512xf32, #tpu.memory_space<any>> -> memref<1x2x256xf32, #tpu.memory_space<any>>
    %21 = tpu.memref_squeeze %20 : memref<1x2x256xf32, #tpu.memory_space<any>> -> memref<2x256xf32, #tpu.memory_space<any>>
    %22 = tpu.memref_slice %arg3[%c1_i32_16] : memref<2x!tpu.dma_semaphore, #tpu.memory_space<semaphore_mem>> -> memref<1x!tpu.dma_semaphore, #tpu.memory_space<semaphore_mem>>
    %23 = tpu.memref_squeeze %22 : memref<1x!tpu.dma_semaphore, #tpu.memory_space<semaphore_mem>> -> memref<!tpu.dma_semaphore, #tpu.memory_space<semaphore_mem>>
    tpu.wait_dma2 semaphore(%23 : memref<!tpu.dma_semaphore, #tpu.memory_space<semaphore_mem>>) src(%19 : memref<2x256xf32, #tpu.memory_space<any>>) dst(%21 : memref<2x256xf32, #tpu.memory_space<any>>)
    return
  }
}

</mosaic_0001>

<llo_original>
// kernel: tpu_custom_call.1
$region0: #{tpu_custom_call.1}
  #allocation0 [shape = 'u32[]', space=smem, size = 0x4, offset = 0x4, fixed_abs, tag = 'smem constant byte address 0x4 - core index']
  #allocation1 [shape = 'u32[72,128]{1,0:T(1,128)}', space=vmem, size = 0x9000, scoped, tag = 'internal scratch']
  #allocation2 [shape = 's32[2]{0}', space=sflag, size = 0x8, scoped, tag = 'scratch operand']
  #allocation3 [shape = 's32[]', space=sflag, size = 0x4, offset = 0, fixed_abs, tag = 'sflag constant byte address 0x0 - dummy sync flag']
  #allocation4 [shape = 'u32[0]{0}', space=smem, size = 0, offset = 0, fixed_abs, tag = 'smem constant byte address 0x0 - null']
  #allocation5 [shape = 's32[]', space=sflag, size = 0x4, offset = 0, fixed_abs, tag = 'sflag constant byte address 0x0 - dummy sync flag']
  #allocation6 [shape = 'u32[0]{0}', space=smem, size = 0, offset = 0, fixed_abs, tag = 'smem constant byte address 0x0 - null']
  %s0 = inlined_call_operand.hbm [shape: f32[2,2,2,256], index: 0, kind: input, shape index: {}]
  %s1 = inlined_call_operand.hbm [shape: f32[2,2,512], index: 1, kind: output, shape index: {}]
  %s2 = sld [smem:[#allocation0]]
  $region9: #{tpu_custom_call.1} parent=0
    _
  %s4 = ssub.s32 1, %s2
  %s5 = scalar_select 0, %s4, %s2
  loop: start=0, step=1, limit=2
  $region2: #{tpu_custom_call.1} parent=0 // loop_pre_header
    _
  $region3: #{tpu_custom_call.1} parent=0 // loop_header
    %s7 = sphi 0, %s11
    %p8 = scmp.ge.s32.totalorder %s7, 2
  $region4: #{tpu_custom_call.1} parent=0 // loop_header_branch
    %10 = sbr.rel (%p8) target = $region8
  $region5: #{tpu_custom_call.1} parent=0 // loop_body
    %s12 = sadd.s32 %s7, 1
    %s13 = smul.u32 %s7, 4
    %s14 = smul.addr %s13, 2
    %s15 = scalar_lea.hbm %s0, %s14
    %s16 = smul.addr %s13, 2
    %s17 = scalar_lea.hbm %s1, %s16
    %s19 = sshll.u32 1, 14
    %s20 = sxor.u32 4294967295, %s19
    %s22 = sshll.u32 %s15, 4
    %s23 = int_to_ptr.hbm [resolvable:$true] %s22
    %s24 = sshll.u32 %s17, 4
    %s25 = int_to_ptr.hbm [resolvable:$true] %s24
    %28 = dma.general %s23, 64, %s25, [#allocation2], [#allocation3], [#allocation4], 0, 0
    %s29 = sadd.s32 2, %s13
    %s30 = smul.addr %s29, 2
    %s31 = scalar_lea.hbm %s0, %s30
    %s32 = smul.addr %s29, 2
    %s33 = scalar_lea.hbm %s1, %s32
    %s34 = scalar_lea.sflag [#allocation2], 1
    %s36 = sshll.u32 1, 14
    %s37 = sxor.u32 4294967295, %s36
    %s39 = sshll.u32 %s31, 4
    %s40 = int_to_ptr.hbm [resolvable:$true] %s39
    %s41 = sshll.u32 %s33, 4
    %s42 = int_to_ptr.hbm [resolvable:$true] %s41
    %45 = dma.general %s40, 64, %s42, %s34, [#allocation5], [#allocation6], 0, 0
    %s46 = smul.u32 2, 1
    %s47 = smul.u32 %s46, 2
    %s48 = sshll.u32 %s47, 4
    %49 = dma.done [#allocation2], %s48
    %s50 = sshll.u32 %s47, 4
    %51 = dma.done %s34, %s50
  $region6: #{tpu_custom_call.1} parent=0 // loop_footer
    %s11 = sadd.s32 1, %s7
  $region7: #{tpu_custom_call.1} parent=0 // loop_footer_branch
    %6 = sbr.rel target = $region3
  $region8: #{tpu_custom_call.1} parent=0 // loop_exit
    _
  %52 = vsyncmov [#allocation2]
  %s53 = vpop.sfrf %52
  %p54 = scmp.eq.s32.totalorder %s53, 0
  %p55 = pneg %p54
  %57 = shalt.err (%p55)
  %s58 = scalar_lea.sflag [#allocation2], 1
  %59 = vsyncmov %s58
  %s60 = vpop.sfrf %59
  %p61 = scmp.eq.s32.totalorder %s60, 0
  %p62 = pneg %p61
  %64 = shalt.err (%p62)

</llo_original>
